<compile_context>
chip_gen: v5e
topology: v5e:2x2
jax: 0.10.0
libtpu: 0.0.40
codegen_flags: <defaults>
</compile_context>

<pallas_src>
import functools

import jax
import jax.numpy as jnp
from jax.experimental import pallas as pl
from jax.experimental.pallas import tpu as pltpu

_LANE = 128      # TPU lane width
_SUBLANE = 8     # TPU sublane width


def _round_up(x, m):
    return ((x + m - 1) // m) * m


def dqn_kernel(x_ref, w1_ref, b1_ref, w2_ref, b2_ref, o_ref, *,
               out_actions, compute_dtype):
    # x:  (TB, in)            w1: (in, h1)  [compute_dtype]   b1: (1, h1)  f32
    # w2: (h1, out_pad) [compute_dtype]     b2: (1, out_pad)  f32
    # o:  (TB, out_actions)
    x = x_ref[...].astype(compute_dtype)

    # fc1: x @ w1 (weights pre-transposed in the wrapper -> canonical layout).
    h = jnp.dot(x, w1_ref[...], preferred_element_type=jnp.float32)
    h = jnp.maximum(h + b1_ref[...], 0.0)                  # fused bias + ReLU

    # out: h @ w2 — lane-dense padded compute tile, VMEM-only.
    y = jnp.dot(h.astype(compute_dtype), w2_ref[...],
                preferred_element_type=jnp.float32)
    y = y + b2_ref[...]

    # Store only the real output columns: padded lanes never reach HBM.
    o_ref[...] = y[:, :out_actions].astype(o_ref.dtype)


def _pick_tile(batch, tile_b):
    b_ceil = _round_up(batch, _SUBLANE)
    tile = max(_SUBLANE, min(_round_up(int(tile_b), _SUBLANE), b_ceil))
    # For large, bandwidth-bound batches keep >= 2 balanced grid steps so the
    # "parallel" batch axis can shard across both TensorCores on v7x.
    if b_ceil >= 2048 and tile >= b_ceil:
        tile = max(_SUBLANE, _round_up((b_ceil + 1) // 2, _SUBLANE))
    return tile


def dqn_forward(x, w1, b1, w2, b2, *, tile_b=4096, compute_dtype=jnp.bfloat16):
    """x: (B, in_states); w1: (h1, in); b1: (h1,); w2: (out, in); b2: (out,)."""
    B, in_states = x.shape
    h1_nodes = w1.shape[0]
    out_actions = w2.shape[0]
    assert w1.shape == (h1_nodes, in_states)
    assert b1.shape == (h1_nodes,)
    assert b2.shape == (out_actions,)
    # Inherited from the reference module: `out` was declared with in_states
    # inputs but consumes fc1's h1_nodes-wide output.
    assert w2.shape[1] == in_states and h1_nodes == in_states, (
        "DQN reference forward requires h1_nodes == in_states"
    )

    # --- one-time (tiny) param prep: transpose + pad + cast for the MXU.
    out_pad = _round_up(max(out_actions, _LANE), _LANE)
    w1t = w1.T.astype(compute_dtype)                        # (in, h1)
    w2t = w2.T                                              # (in==h1, out)
    if out_pad != out_actions:
        w2t = jnp.pad(w2t, ((0, 0), (0, out_pad - out_actions)))
        b2p = jnp.pad(b2, (0, out_pad - out_actions))
    else:
        b2p = b2
    w2t = w2t.astype(compute_dtype)                         # (h1, out_pad)
    b1r = b1.reshape(1, h1_nodes).astype(jnp.float32)
    b2r = b2p.reshape(1, out_pad).astype(jnp.float32)

    # --- batch tiling: no wrapper-side padding; Pallas clips the ragged block.
    tile = _pick_tile(B, tile_b)
    grid = (pl.cdiv(B, tile),)

    resident = lambda i: (0, 0)   # weights/biases stay in VMEM across all steps
    kernel = functools.partial(
        dqn_kernel, out_actions=out_actions, compute_dtype=compute_dtype)

    return pl.pallas_call(
        kernel,
        out_shape=jax.ShapeDtypeStruct((B, out_actions), x.dtype),
        grid=grid,
        in_specs=[
            pl.BlockSpec((tile, in_states), lambda i: (i, 0)),   # x: pipelined
            pl.BlockSpec((in_states, h1_nodes), resident),       # w1^T
            pl.BlockSpec((1, h1_nodes), resident),               # b1
            pl.BlockSpec((h1_nodes, out_pad), resident),         # w2^T (padded)
            pl.BlockSpec((1, out_pad), resident),                # b2 (padded)
        ],
        out_specs=pl.BlockSpec((tile, out_actions), lambda i: (i, 0)),
        compiler_params=pltpu.CompilerParams(
            dimension_semantics=("parallel",),   # batch axis -> 2 TCs on v7x
        ),
    )(x, w1t, b1r, w2t, b2r)


def _reference(x, w1, b1, w2, b2):
    h = jnp.maximum(x @ w1.T + b1, 0.0)
    return h @ w2.T + b2


if __name__ == "__main__":
    # Small shapes consistent with the module's forward:
    # h1_nodes must equal in_states for the reference forward to be valid.
    batch = 4
    in_states = 32
    h1_nodes = 32          # == in_states (required by the reference module)
    out_actions = 8

    key = jax.random.PRNGKey(0)
    kx, k1, kb1, k2, kb2 = jax.random.split(key, 5)

    # Deterministic init, PyTorch-Linear-style uniform(-1/sqrt(fan_in), +).
    bound = 1.0 / jnp.sqrt(jnp.float32(in_states))
    x  = jax.random.normal(kx, (batch, in_states), dtype=jnp.float32)
    w1 = jax.random.uniform(k1, (h1_nodes, in_states), jnp.float32, -bound, bound)
    b1 = jax.random.uniform(kb1, (h1_nodes,), jnp.float32, -bound, bound)
    w2 = jax.random.uniform(k2, (out_actions, in_states), jnp.float32, -bound, bound)
    b2 = jax.random.uniform(kb2, (out_actions,), jnp.float32, -bound, bound)

    y = dqn_forward(x, w1, b1, w2, b2)
    jax.block_until_ready(y)

    y_ref = _reference(x, w1, b1, w2, b2)
    assert y.shape == (batch, out_actions)
    # bf16 matmul operands (f32 accumulation) -> bf16-appropriate tolerance.
    assert jnp.allclose(y, y_ref, atol=5e-2, rtol=5e-2), "mismatch vs reference"

    print("KERNEL_OK")
</pallas_src>

<mosaic_0001>
module attributes {stable_mosaic.version = 11 : i64} {
  func.func @dqn_kernel(%arg0: i32, %arg1: memref<8x32xf32, #tpu.memory_space<vmem>>, %arg2: memref<32x32xbf16, #tpu.memory_space<vmem>>, %arg3: memref<1x32xf32, #tpu.memory_space<vmem>>, %arg4: memref<32x128xbf16, #tpu.memory_space<vmem>>, %arg5: memref<1x128xf32, #tpu.memory_space<vmem>>, %arg6: memref<8x8xf32, #tpu.memory_space<vmem>>) attributes {dimension_semantics = [#tpu.dimension_semantics<parallel>], iteration_bounds = array<i64: 1>, scalar_prefetch = 0 : i64, scratch_operands = 0 : i64, tpu.core_type = #tpu.core_type<tc>, window_params = [{transform_indices = @transform_0, window_bounds = array<i64: 8, 32>}, {pipeline_mode = #tpu.pipeline_mode<synchronous>, transform_indices = @transform_1, window_bounds = array<i64: 32, 32>}, {pipeline_mode = #tpu.pipeline_mode<synchronous>, transform_indices = @transform_2, window_bounds = array<i64: 1, 32>}, {pipeline_mode = #tpu.pipeline_mode<synchronous>, transform_indices = @transform_3, window_bounds = array<i64: 32, 128>}, {pipeline_mode = #tpu.pipeline_mode<synchronous>, transform_indices = @transform_4, window_bounds = array<i64: 1, 128>}, {transform_indices = @transform_5, window_bounds = array<i64: 8, 8>}]} {
    %c0 = arith.constant 0 : index
    %c0_0 = arith.constant 0 : index
    %0 = vector.load %arg1[%c0, %c0_0] : memref<8x32xf32, #tpu.memory_space<vmem>>, vector<8x32xf32>
    %1 = arith.truncf %0 : vector<8x32xf32> to vector<8x32xbf16>
    %c0_1 = arith.constant 0 : index
    %c0_2 = arith.constant 0 : index
    %2 = vector.load %arg2[%c0_1, %c0_2] : memref<32x32xbf16, #tpu.memory_space<vmem>>, vector<32x32xbf16>
    %cst = arith.constant dense<0.000000e+00> : vector<8x32xf32>
    %3 = tpu.matmul %1, %2, %cst {dimension_numbers = #tpu.dot_dimension_numbers<[1], [0], [0], [1], [0, 0, 1, 1], [], []>} : vector<8x32xbf16>, vector<32x32xbf16>, vector<8x32xf32> -> vector<8x32xf32>
    %c0_3 = arith.constant 0 : index
    %c0_4 = arith.constant 0 : index
    %4 = vector.load %arg3[%c0_3, %c0_4] : memref<1x32xf32, #tpu.memory_space<vmem>>, vector<1x32xf32>
    %5 = vector.broadcast %4 : vector<1x32xf32> to vector<8x32xf32>
    %6 = arith.addf %3, %5 : vector<8x32xf32>
    %cst_5 = arith.constant 0.000000e+00 : f32
    %7 = vector.broadcast %cst_5 : f32 to vector<8x32xf32>
    %8 = arith.maximumf %6, %7 : vector<8x32xf32>
    %9 = arith.truncf %8 : vector<8x32xf32> to vector<8x32xbf16>
    %c0_6 = arith.constant 0 : index
    %c0_7 = arith.constant 0 : index
    %10 = vector.load %arg4[%c0_6, %c0_7] : memref<32x128xbf16, #tpu.memory_space<vmem>>, vector<32x128xbf16>
    %cst_8 = arith.constant dense<0.000000e+00> : vector<8x128xf32>
    %11 = tpu.matmul %9, %10, %cst_8 {dimension_numbers = #tpu.dot_dimension_numbers<[1], [0], [0], [1], [0, 0, 1, 1], [], []>} : vector<8x32xbf16>, vector<32x128xbf16>, vector<8x128xf32> -> vector<8x128xf32>
    %c0_9 = arith.constant 0 : index
    %c0_10 = arith.constant 0 : index
    %12 = vector.load %arg5[%c0_9, %c0_10] : memref<1x128xf32, #tpu.memory_space<vmem>>, vector<1x128xf32>
    %13 = vector.broadcast %12 : vector<1x128xf32> to vector<8x128xf32>
    %14 = arith.addf %11, %13 : vector<8x128xf32>
    %15 = vector.extract_strided_slice %14 {offsets = [0, 0], sizes = [8, 8], strides = [1, 1]} : vector<8x128xf32> to vector<8x8xf32>
    %c0_11 = arith.constant 0 : index
    %c0_12 = arith.constant 0 : index
    %16 = vector.load %arg6[%c0_11, %c0_12] : memref<8x8xf32, #tpu.memory_space<vmem>>, vector<8x8xf32>
    tpu.vector_store %arg6[%c0_11, %c0_12], %15 {strides = array<i32>} : memref<8x8xf32, #tpu.memory_space<vmem>>, vector<8x8xf32>,
    return
  }
  func.func @transform_0(%arg0: i32) -> (i32, i32) {
    %c0_i32 = arith.constant 0 : i32
    %c0_i32_0 = arith.constant 0 : i32
    return %arg0, %c0_i32 : i32, i32
  }
  func.func @transform_1(%arg0: i32) -> (i32, i32) {
    %c0_i32 = arith.constant 0 : i32
    %c0_i32_0 = arith.constant 0 : i32
    %c0_i32_1 = arith.constant 0 : i32
    return %c0_i32, %c0_i32_0 : i32, i32
  }
  func.func @transform_2(%arg0: i32) -> (i32, i32) {
    %c0_i32 = arith.constant 0 : i32
    %c0_i32_0 = arith.constant 0 : i32
    %c0_i32_1 = arith.constant 0 : i32
    return %c0_i32, %c0_i32_0 : i32, i32
  }
  func.func @transform_3(%arg0: i32) -> (i32, i32) {
    %c0_i32 = arith.constant 0 : i32
    %c0_i32_0 = arith.constant 0 : i32
    %c0_i32_1 = arith.constant 0 : i32
    return %c0_i32, %c0_i32_0 : i32, i32
  }
  func.func @transform_4(%arg0: i32) -> (i32, i32) {
    %c0_i32 = arith.constant 0 : i32
    %c0_i32_0 = arith.constant 0 : i32
    %c0_i32_1 = arith.constant 0 : i32
    return %c0_i32, %c0_i32_0 : i32, i32
  }
  func.func @transform_5(%arg0: i32) -> (i32, i32) {
    %c0_i32 = arith.constant 0 : i32
    %c0_i32_0 = arith.constant 0 : i32
    return %arg0, %c0_i32 : i32, i32
  }
}

</mosaic_0001>

<llo_original>
// kernel: tpu_custom_call.1
$region0: #{tpu_custom_call.1}
  #allocation0 [shape = 'u32[]', space=smem, size = 0x4, offset = 0x4, fixed_abs, tag = 'smem constant byte address 0x4 - core index']
  #allocation1 [shape = 'u32[72,128]{1,0:T(1,128)}', space=vmem, size = 0x9000, scoped, tag = 'internal scratch']
  %s0 = inlined_call_operand.hbm [shape: f32[4,32], index: 0, kind: input, shape index: {}]
  %s1 = inlined_call_operand.hbm [shape: bf16[32,32], index: 1, kind: input, shape index: {}]
  %s2 = inlined_call_operand.vmem [shape: f32[1,32], index: 2, kind: input, shape index: {}]
  %s3 = inlined_call_operand.hbm [shape: bf16[32,128], index: 3, kind: input, shape index: {}]
  %s4 = inlined_call_operand.vmem [shape: f32[1,128], index: 4, kind: input, shape index: {}]
  %s5 = inlined_call_operand.hbm [shape: f32[4,8], index: 5, kind: output, shape index: {}]
  %s6 = sld [smem:[#allocation0]]
  $region42: #{tpu_custom_call.1} parent=0
    _
  %s8 = ssub.s32 1, %s6
  %s9 = scalar_select 0, %s8, %s6
  $region1: #{tpu_custom_call.1} parent=0
    #allocation2 [shape = 'u8[4096]{0}', space=vmem, size = 0x1000, scoped, tag = 'input window, operand 0, single buffered']
    #allocation3 [shape = 's32[1]{0}', space=sflag, size = 0x4, scoped, tag = 'scoped memory for tpu_custom_call.1']
    #allocation4 [shape = 's32[1]{0}', space=sflag, size = 0x4, scoped, tag = 'scoped memory for tpu_custom_call.1']
    #allocation5 [shape = 'u8[8192]{0}', space=vmem, size = 0x2000, scoped, tag = 'input window, operand 1, single buffered']
    #allocation6 [shape = 's32[1]{0}', space=sflag, size = 0x4, scoped, tag = 'scoped memory for tpu_custom_call.1']
    #allocation7 [shape = 'u8[8192]{0}', space=vmem, size = 0x2000, scoped, tag = 'input window, operand 3, single buffered']
    #allocation8 [shape = 'u8[4096]{0}', space=vmem, size = 0x1000, scoped, tag = 'output window, operand 0, single buffered']
    %10 = vsyncpa [#allocation3], 0
    %11 = vsyncpa [#allocation6], 0
    %12 = vsyncpa [#allocation4], 0
    // Predicated region
    $region2: #{tpu_custom_call.1} parent=1 // pred_check
      _
    $region3: #{tpu_custom_call.1} parent=1 // pred_check_branch
      %14 = sbr.rel (0) target = $region5
    $region4: #{tpu_custom_call.1} parent=1 // pred_region
      %16 = vsyncadd [#allocation3], 64
      %s17 = sshll.u32 %s0, 4
      %s18 = int_to_ptr.hbm [resolvable:$true] %s17
      %s19 = sshll.u32 [#allocation2], 4
      %s20 = int_to_ptr.vmem [resolvable:$true] %s19
      %25 = dma.hbm_to_vmem [thread:$0]  %s18, 64, %s20, [#allocation3], 64, 64, 4
    $region5: #{tpu_custom_call.1} parent=1 // pred_fallthru
      _
    // Predicated region
    $region6: #{tpu_custom_call.1} parent=1 // pred_check
      _
    $region7: #{tpu_custom_call.1} parent=1 // pred_check_branch
      %27 = sbr.rel (0) target = $region9
    $region8: #{tpu_custom_call.1} parent=1 // pred_region
      %29 = vsyncadd [#allocation6], 0
      %s30 = sshll.u32 %s1, 4
      %s31 = int_to_ptr.hbm [resolvable:$true] %s30
      %s32 = sshll.u32 [#allocation5], 4
      %s33 = int_to_ptr.vmem [resolvable:$true] %s32
      %38 = dma.hbm_to_vmem [thread:$0]  %s31, 256, %s33, [#allocation6], 64, 64, 4
    $region9: #{tpu_custom_call.1} parent=1 // pred_fallthru
      _
    // Predicated region
    $region10: #{tpu_custom_call.1} parent=1 // pred_check
      _
    $region11: #{tpu_custom_call.1} parent=1 // pred_check_branch
      %40 = sbr.rel (0) target = $region13
    $region12: #{tpu_custom_call.1} parent=1 // pred_region
      _
    $region13: #{tpu_custom_call.1} parent=1 // pred_fallthru
      _
    // Predicated region
    $region14: #{tpu_custom_call.1} parent=1 // pred_check
      _
    $region15: #{tpu_custom_call.1} parent=1 // pred_check_branch
      %42 = sbr.rel (0) target = $region17
    $region16: #{tpu_custom_call.1} parent=1 // pred_region
      %44 = vsyncadd [#allocation6], 0
      %s45 = sshll.u32 %s3, 4
      %s46 = int_to_ptr.hbm [resolvable:$true] %s45
      %s47 = sshll.u32 [#allocation7], 4
      %s48 = int_to_ptr.vmem [resolvable:$true] %s47
      %53 = dma.hbm_to_vmem [thread:$0]  %s46, 256, %s48, [#allocation6], 64, 64, 4
    $region17: #{tpu_custom_call.1} parent=1 // pred_fallthru
      _
    // Predicated region
    $region18: #{tpu_custom_call.1} parent=1 // pred_check
      _
    $region19: #{tpu_custom_call.1} parent=1 // pred_check_branch
      %55 = sbr.rel (0) target = $region21
    $region20: #{tpu_custom_call.1} parent=1 // pred_region
      _
    $region21: #{tpu_custom_call.1} parent=1 // pred_fallthru
      _
    // Predicated region
    $region22: #{tpu_custom_call.1} parent=1 // pred_check
      _
    $region23: #{tpu_custom_call.1} parent=1 // pred_check_branch
      %57 = sbr.rel (0) target = $region25
    $region24: #{tpu_custom_call.1} parent=1 // pred_region
      %59 = dma.done [#allocation3], 128
    $region25: #{tpu_custom_call.1} parent=1 // pred_fallthru
      _
    // Predicated region
    $region26: #{tpu_custom_call.1} parent=1 // pred_check
      _
    $region27: #{tpu_custom_call.1} parent=1 // pred_check_branch
      %61 = sbr.rel (0) target = $region29
    $region28: #{tpu_custom_call.1} parent=1 // pred_region
      %63 = dma.done [#allocation6], 256
    $region29: #{tpu_custom_call.1} parent=1 // pred_fallthru
      _
    // Predicated region
    $region30: #{tpu_custom_call.1} parent=1 // pred_check
      _
    $region31: #{tpu_custom_call.1} parent=1 // pred_check_branch
      %65 = sbr.rel (0) target = $region33
    $region32: #{tpu_custom_call.1} parent=1 // pred_region
      %67 = dma.done [#allocation6], 256
    $region33: #{tpu_custom_call.1} parent=1 // pred_fallthru
      _
    %v69 = vld [vmem:[#allocation2] sm:$0xff]
    %v70 = vpack.c.bf16 %v69, %v69
    %v71 = vld [vmem:[#allocation5] sm:$0xf]
    %v72 = vld [vmem:[#allocation5 + $0x4] sm:$0xf]
    %v73 = vld [vmem:[#allocation5 + $0x8] sm:$0xf]
    %v74 = vld [vmem:[#allocation5 + $0xc] sm:$0xf]
    %v75 = vld [vmem:[%s2] sm:$0x1]
    %v77 = vperm.slane %v75, 0
    %v83 = vunpack.c.l.b16 %v71
    %v84 = vunpack.c.l.b16 %v72
    %v85 = vunpack.c.l.b16 %v73
    %v86 = vunpack.c.l.b16 %v74
    %v87 = vpack.c.b16 %v84, %v83
    %v88 = vpack.c.b16 %v86, %v85
    %vm91 = vcmask 261120
    %v93 = vsel %vm91, %v70, 0
    %95 = vmatpush.bf16.msra.mxu0 0
    %96 = vmatpush.bf16.msra.mxu0 0
    %97 = vmatpush.bf16.msra.mxu0 0
    %98 = vmatpush.bf16.msra.mxu0 0
    %99 = vmatpush.bf16.msra.mxu0 0
    %100 = vmatpush.bf16.msra.mxu0 0
    %101 = vmatpush.bf16.msra.mxu0 %v88
    %102 = vmatpush.bf16.msra.mxu0 %v87
    %103 = vmatmul.bf16.gmra.mxu0 %v93
    %v104 = vpop.f32.mrf.mxu0
    %v105 = vadd.f32 %v77, %v104
    %v106 = vpop.f32.mrf.mxu0
    %107 = vdwg.mxu0
    %v108 = vmax.f32 %v105, 0.0
    %v109 = vpack.c.bf16 %v108, %v108
    %v110 = vld [vmem:[#allocation7] sm:$0xf]
    %v111 = vld [vmem:[#allocation7 + $0x4] sm:$0xf]
    %v112 = vld [vmem:[#allocation7 + $0x8] sm:$0xf]
    %v113 = vld [vmem:[#allocation7 + $0xc] sm:$0xf]
    %v114 = vld [vmem:[%s4] sm:$0x1]
    %v116 = vperm.slane %v114, 0
    %v122 = vunpack.c.l.b16 %v110
    %v123 = vunpack.c.l.b16 %v111
    %v124 = vunpack.c.l.b16 %v112
    %v125 = vunpack.c.l.b16 %v113
    %v126 = vpack.c.b16 %v123, %v122
    %v127 = vpack.c.b16 %v125, %v124
    %v131 = vsel %vm91, %v109, 0
    %133 = vmatpush.bf16.msra.mxu0 0
    %134 = vmatpush.bf16.msra.mxu0 0
    %135 = vmatpush.bf16.msra.mxu0 0
    %136 = vmatpush.bf16.msra.mxu0 0
    %137 = vmatpush.bf16.msra.mxu0 0
    %138 = vmatpush.bf16.msra.mxu0 0
    %139 = vmatpush.bf16.msra.mxu0 %v127
    %140 = vmatpush.bf16.msra.mxu0 %v126
    %141 = vmatmul.bf16.gmra.mxu0 %v131
    %v142 = vpop.f32.mrf.mxu0
    %v143 = vadd.f32 %v116, %v142
    %v144 = vpop.f32.mrf.mxu0
    %145 = vdwg.mxu0
    %vm146 = vcmask 64512
    %147 = vst.msk [vmem:[#allocation8] sm:$0xff] %vm146, %v143
    // Predicated region
    $region34: #{tpu_custom_call.1} parent=1 // pred_check
      _
    $region35: #{tpu_custom_call.1} parent=1 // pred_check_branch
      %149 = sbr.rel (0) target = $region37
    $region36: #{tpu_custom_call.1} parent=1 // pred_region
      %151 = vsyncadd [#allocation4], 64
      %s152 = sshll.u32 [#allocation8], 4
      %s153 = int_to_ptr.vmem [resolvable:$true] %s152
      %s154 = sshll.u32 %s5, 4
      %s155 = int_to_ptr.hbm [resolvable:$true] %s154
      %160 = dma.vmem_to_hbm [thread:$0]  %s153, 64, %s155, [#allocation4], 64, 64, 4
    $region37: #{tpu_custom_call.1} parent=1 // pred_fallthru
      _
    // Predicated region
    $region38: #{tpu_custom_call.1} parent=1 // pred_check
      _
    $region39: #{tpu_custom_call.1} parent=1 // pred_check_branch
      %162 = sbr.rel (0) target = $region41
    $region40: #{tpu_custom_call.1} parent=1 // pred_region
      %164 = dma.done [#allocation4], 128
    $region41: #{tpu_custom_call.1} parent=1 // pred_fallthru
      _
    %165 = vsyncpa [#allocation3], 1
    %166 = vsyncpa [#allocation6], 1
    %167 = vsyncpa [#allocation4], 1

</llo_original>
